<compile_context>
chip_gen: v6e
topology: v6e:2x2x1
jax: 0.10.0
libtpu: 0.0.40
codegen_flags: <defaults>
</compile_context>

<pallas_src>
import functools

import jax
import jax.numpy as jnp
from jax import lax
from jax.experimental import pallas as pl
from jax.experimental.pallas import tpu as pltpu

_LANES = 128
_SUB = 8  # sublanes per f32 vreg


def _dice_partial_kernel(logits_ref, label_ref, out_ref, *, p, num_ch, tile_r,
                         n_inner, n_valid_pix, needs_mask):
    # logits_ref: (C, tile_r, 128) native dtype (bf16/f32)
    # label_ref:  (tile_r, 128) int8; ignored pixels already remapped to num_ch
    # out_ref:    (3, C, 8, 128) f32 resident accumulator over the inner axis:
    #             [0] numerator stream, [1] denominator stream, [2] match count
    t_idx = pl.program_id(2)

    @pl.when(t_idx == 0)
    def _():
        out_ref[...] = jnp.zeros_like(out_ref)

    lb = label_ref[...].astype(jnp.int32)                     # (T, 128)

    if needs_mask:
        # One pixel-validity mask per tile covers: array padding (corner case),
        # uneven row tiling (tail block OOB rows) and megacore phantom blocks.
        row_block = pl.program_id(1) * n_inner + t_idx        # un-clamped index
        pix0 = row_block * (tile_r * _LANES)
        r_io = lax.broadcasted_iota(jnp.int32, (tile_r, _LANES), 0)
        l_io = lax.broadcasted_iota(jnp.int32, (tile_r, _LANES), 1)
        valid = (pix0 + r_io * _LANES + l_io) < n_valid_pix   # (T, 128) bool
        lb = jnp.where(valid, lb, num_ch)                     # never match OOB
    else:
        valid = None

    def red8(v):
        # (T, 128) -> (8, 128): layout-trivial sublane split + VPU vreg adds
        # (no cross-sublane XLU reduce; lane/sublane finish happens in XLA).
        return jnp.sum(v.reshape(tile_r // _SUB, _SUB, _LANES), axis=0)

    for c in range(num_ch):                                   # unrolled, static
        x = logits_ref[c].astype(jnp.float32)                 # (T, 128)
        th = jnp.tanh(0.5 * x)                                # sigmoid = 0.5*th+0.5
        match = lb == c

        if p == 1:
            # Affine fold: accumulate raw tanh sums; 0.5*(.)+0.5 is applied
            # once per (n, c) in the wrapper instead of per element.
            num_s = jnp.where(match, th, 0.0)
            den_s = jnp.where(valid, th, 0.0) if needs_mask else th
        else:
            probs = 0.5 * th + 0.5
            if p == 2:
                pp = probs * probs
            elif isinstance(p, int) and p > 0:
                pp = probs
                for _ in range(p - 1):                        # keep pow off EUP
                    pp = pp * probs
            else:
                pp = probs ** p                               # TODO(synk): non-integer p hits the log/exp EUP path
            num_s = jnp.where(match, probs, 0.0)
            den_s = jnp.where(valid, pp, 0.0) if needs_mask else pp

        cnt_s = jnp.where(match, 1.0, 0.0)

        out_ref[0, c] = out_ref[0, c] + red8(num_s)
        out_ref[1, c] = out_ref[1, c] + red8(den_s)
        out_ref[2, c] = out_ref[2, c] + red8(cnt_s)


def generalized_soft_dice_loss(logits, label, *, p=1, smooth=1.0,
                               reduction="mean", weight=None, ignore_lb=255):
    """logits: (N, C, H, W) float; label: (N, H, W) int. Returns scalar loss."""
    N, C, H, W = logits.shape
    HW = H * W
    assert C < 127, "int8 label sentinel requires C < 127"

    # Ignored pixels -> sentinel channel C (never matches a real channel);
    # labels travel as int8 to cut their HBM traffic 4x.
    lb_flat = label.reshape(N, HW)
    lb_flat = jnp.where(lb_flat == ignore_lb, C, lb_flat).astype(jnp.int8)
    lg_flat = logits.reshape(N, C, HW)                        # native dtype

    R = pl.cdiv(HW, _LANES)
    r_total = max(R, _SUB)
    padded = (r_total * _LANES != HW)
    if padded:
        # Corner case only (HW % 128 != 0 or HW < 1024); pad values are
        # irrelevant because the in-kernel validity mask zeroes them.
        hw_total = r_total * _LANES
        lg_flat = jnp.pad(lg_flat, ((0, 0), (0, 0), (0, hw_total - HW)))
        lb_flat = jnp.pad(lb_flat, ((0, 0), (0, hw_total - HW)),
                          constant_values=C)

    lg_k = lg_flat.reshape(N, C, r_total, _LANES)             # free when !padded
    lb_k = lb_flat.reshape(N, r_total, _LANES)

    # Tile rows from a ~2 MiB logits-block budget (double-buffered it stays
    # well inside the 16/32/32 MiB scoped-VMEM defaults on v5e/v6e/v7x, with
    # the per-channel-loop temporaries bounded to a few (tile_r,128) slabs).
    itemsize = jnp.dtype(logits.dtype).itemsize
    target_block_bytes = 2 * 1024 * 1024
    rows_fit = max(_SUB, target_block_bytes // (C * _LANES * itemsize))
    if rows_fit >= 32:
        max_tile_r = min(1024, (rows_fit // 32) * 32)         # int8-friendly
    else:
        max_tile_r = (rows_fit // _SUB) * _SUB
    tile_r = min(max_tile_r, (r_total // _SUB) * _SUB)
    assert tile_r % _SUB == 0 and tile_r >= _SUB

    n_blocks = pl.cdiv(r_total, tile_r)
    # Megacore (v7x): split the spatial axis when it is free (even split) or
    # when N==1 would otherwise leave a TensorCore idle.
    n_outer = 2 if (n_blocks >= 2 and (n_blocks % 2 == 0 or N == 1)) else 1
    n_inner = pl.cdiv(n_blocks, n_outer)
    needs_mask = padded or (n_outer * n_inner * tile_r != r_total)
    last_blk = n_blocks - 1

    def lg_map(n, o, t):
        return (n, 0, jnp.minimum(o * n_inner + t, last_blk), 0)

    def lb_map(n, o, t):
        return (n, jnp.minimum(o * n_inner + t, last_blk), 0)

    kernel = functools.partial(
        _dice_partial_kernel, p=p, num_ch=C, tile_r=tile_r, n_inner=n_inner,
        n_valid_pix=HW, needs_mask=needs_mask)

    out_bytes = N * n_outer * 3 * C * _SUB * _LANES * 4
    cost = pl.CostEstimate(
        flops=int(8 * N * C * r_total * _LANES),
        transcendentals=int(N * C * r_total * _LANES),
        bytes_accessed=int(lg_k.size * itemsize + lb_k.size + out_bytes))

    partials = pl.pallas_call(
        kernel,
        out_shape=jax.ShapeDtypeStruct((N, n_outer, 3, C, _SUB, _LANES),
                                       jnp.float32),
        grid_spec=pltpu.PrefetchScalarGridSpec(
            num_scalar_prefetch=0,
            grid=(N, n_outer, n_inner),
            in_specs=[
                pl.BlockSpec((None, C, tile_r, _LANES), lg_map),
                pl.BlockSpec((None, tile_r, _LANES), lb_map),
            ],
            out_specs=pl.BlockSpec((None, None, 3, C, _SUB, _LANES),
                                   lambda n, o, t: (n, o, 0, 0, 0, 0)),
        ),
        compiler_params=pltpu.CompilerParams(
            dimension_semantics=("parallel", "parallel", "arbitrary"),
            vmem_limit_bytes=32 * 1024 * 1024),
        cost_estimate=cost,
    )(lg_k, lb_k)

    # Tiny finish in plain JAX: 8-sublane + 128-lane + outer reductions,
    # affine-sigmoid correction (p==1), smooth/weight/mean.
    s_num = jnp.sum(partials[:, :, 0], axis=(1, 3, 4))        # (N, C)
    s_den = jnp.sum(partials[:, :, 1], axis=(1, 3, 4))        # (N, C)
    cnt = jnp.sum(partials[:, :, 2], axis=(1, 3, 4))          # (N, C)

    if p == 1:
        numer = 0.5 * s_num + 0.5 * cnt                       # sum(probs*onehot)
        denom = 0.5 * s_den + 0.5 * float(HW) + cnt           # sum(probs)+count
    else:
        numer = s_num
        denom = s_den + cnt

    if weight is not None:
        w = jnp.asarray(weight, jnp.float32).reshape(1, -1)
        numer = numer * w
        denom = denom * w

    numer = jnp.sum(numer, axis=1)
    denom = jnp.sum(denom, axis=1)
    loss = 1.0 - (2.0 * numer + smooth) / (denom + smooth)
    if reduction == "mean":
        loss = jnp.mean(loss)
    return loss


if __name__ == "__main__":
    key = jax.random.PRNGKey(0)
    k1, k2, k3 = jax.random.split(key, 3)

    N, C, H, W = 2, 4, 16, 16
    logits = jax.random.normal(k1, (N, C, H, W), jnp.float32)
    label = jax.random.randint(k2, (N, H, W), 0, C, jnp.int32)
    ignore_mask = jax.random.bernoulli(k3, 0.1, (N, H, W))
    label = jnp.where(ignore_mask, 255, label)                # some ignored pixels

    loss = generalized_soft_dice_loss(logits, label, p=1, smooth=1.0,
                                      reduction="mean", weight=None,
                                      ignore_lb=255)
    loss = jax.block_until_ready(loss)

    # Pure-JAX reference (mirrors the PyTorch module semantics).
    probs = jax.nn.sigmoid(logits)
    valid = (label != 255)
    lab0 = jnp.where(valid, label, 0)
    one_hot = jax.nn.one_hot(lab0, C, axis=1, dtype=jnp.float32)
    one_hot = one_hot * valid[:, None, :, :].astype(jnp.float32)
    numer_r = jnp.sum(probs * one_hot, axis=(2, 3)).sum(axis=1)
    denom_r = jnp.sum(probs + one_hot, axis=(2, 3)).sum(axis=1)
    ref = jnp.mean(1.0 - (2.0 * numer_r + 1.0) / (denom_r + 1.0))
    assert jnp.allclose(loss, ref, atol=1e-5, rtol=1e-5), (loss, ref)

    print("KERNEL_OK")
</pallas_src>

<mosaic_0001>
module attributes {stable_mosaic.version = 11 : i64} {
  func.func @_dice_partial_kernel(%arg0: i32, %arg1: i32, %arg2: i32, %arg3: memref<1x4x8x128xf32, #tpu.memory_space<vmem>>, %arg4: memref<1x8x128xi8, #tpu.memory_space<vmem>>, %arg5: memref<1x1x3x4x8x128xf32, #tpu.memory_space<vmem>>) attributes {dimension_semantics = [#tpu.dimension_semantics<parallel>, #tpu.dimension_semantics<parallel>, #tpu.dimension_semantics<arbitrary>], iteration_bounds = array<i64: 2, 1, 1>, scalar_prefetch = 0 : i64, scratch_operands = 0 : i64, tpu.core_type = #tpu.core_type<tc>, window_params = [{transform_indices = @transform_0, window_bounds = array<i64: 1, 4, 8, 128>}, {transform_indices = @transform_1, window_bounds = array<i64: 1, 8, 128>}, {transform_indices = @transform_2, window_bounds = array<i64: 1, 1, 3, 4, 8, 128>}]} {
    %c0_i32 = arith.constant 0 : i32
    %0 = arith.cmpi eq, %arg2, %c0_i32 : i32
    %1 = arith.extui %0 : i1 to i32
    %c0_i32_0 = arith.constant 0 : i32
    %2 = arith.cmpi ne, %1, %c0_i32_0 : i32
    scf.if %2 {
      %cst_193 = arith.constant 0.000000e+00 : f32
      %172 = vector.broadcast %cst_193 : f32 to vector<3x4x8x128xf32>
      %c0_194 = arith.constant 0 : index
      %c0_195 = arith.constant 0 : index
      %c0_196 = arith.constant 0 : index
      %c0_197 = arith.constant 0 : index
      %c0_198 = arith.constant 0 : index
      %c0_199 = arith.constant 0 : index
      %173 = vector.load %arg5[%c0_194, %c0_195, %c0_196, %c0_197, %c0_198, %c0_199] : memref<1x1x3x4x8x128xf32, #tpu.memory_space<vmem>>, vector<1x1x3x4x8x128xf32>
      %174 = vector.shape_cast %173 : vector<1x1x3x4x8x128xf32> to vector<3x4x8x128xf32>
      %175 = vector.shape_cast %172 : vector<3x4x8x128xf32> to vector<1x1x3x4x8x128xf32>
      tpu.vector_store %arg5[%c0_194, %c0_195, %c0_196, %c0_197, %c0_198, %c0_199], %175 {strides = array<i32>} : memref<1x1x3x4x8x128xf32, #tpu.memory_space<vmem>>, vector<1x1x3x4x8x128xf32>,
    } else {
    }
    %c0 = arith.constant 0 : index
    %c0_1 = arith.constant 0 : index
    %c0_2 = arith.constant 0 : index
    %3 = vector.load %arg4[%c0, %c0_1, %c0_2] : memref<1x8x128xi8, #tpu.memory_space<vmem>>, vector<1x8x128xi8>
    %4 = vector.shape_cast %3 : vector<1x8x128xi8> to vector<8x128xi8>
    %5 = arith.extsi %4 : vector<8x128xi8> to vector<8x128xi32>
    %c1_i32 = arith.constant 1 : i32
    %6 = arith.muli %arg1, %c1_i32 : i32
    %7 = arith.addi %6, %arg2 : i32
    %c1024_i32 = arith.constant 1024 : i32
    %8 = arith.muli %7, %c1024_i32 : i32
    %9 = tpu.iota {dimensions = array<i32: 0>} : vector<8x128xi32>
    %10 = tpu.iota {dimensions = array<i32: 1>} : vector<8x128xi32>
    %c128_i32 = arith.constant 128 : i32
    %11 = vector.broadcast %c128_i32 : i32 to vector<8x128xi32>
    %12 = arith.muli %9, %11 : vector<8x128xi32>
    %13 = vector.broadcast %8 : i32 to vector<8x128xi32>
    %14 = arith.addi %13, %12 : vector<8x128xi32>
    %15 = arith.addi %14, %10 : vector<8x128xi32>
    %c256_i32 = arith.constant 256 : i32
    %16 = vector.broadcast %c256_i32 : i32 to vector<8x128xi32>
    %17 = arith.cmpi slt, %15, %16 : vector<8x128xi32>
    %c4_i32 = arith.constant 4 : i32
    %18 = vector.broadcast %c4_i32 : i32 to vector<8x128xi32>
    %19 = arith.select %17, %5, %18 : vector<8x128xi1>, vector<8x128xi32>
    %c0_3 = arith.constant 0 : index
    %c0_4 = arith.constant 0 : index
    %c0_5 = arith.constant 0 : index
    %c0_6 = arith.constant 0 : index
    %20 = vector.load %arg3[%c0_3, %c0_4, %c0_5, %c0_6] : memref<1x4x8x128xf32, #tpu.memory_space<vmem>>, vector<1x1x8x128xf32>
    %21 = vector.shape_cast %20 : vector<1x1x8x128xf32> to vector<8x128xf32>
    %cst = arith.constant 5.000000e-01 : f32
    %22 = vector.broadcast %cst : f32 to vector<8x128xf32>
    %23 = arith.mulf %22, %21 : vector<8x128xf32>
    %24 = math.tanh %23 : vector<8x128xf32>
    %c0_i32_7 = arith.constant 0 : i32
    %25 = vector.broadcast %c0_i32_7 : i32 to vector<8x128xi32>
    %26 = arith.cmpi eq, %19, %25 : vector<8x128xi32>
    %cst_8 = arith.constant 0.000000e+00 : f32
    %27 = vector.broadcast %cst_8 : f32 to vector<8x128xf32>
    %28 = arith.select %26, %24, %27 : vector<8x128xi1>, vector<8x128xf32>
    %cst_9 = arith.constant 0.000000e+00 : f32
    %29 = vector.broadcast %cst_9 : f32 to vector<8x128xf32>
    %30 = arith.select %17, %24, %29 : vector<8x128xi1>, vector<8x128xf32>
    %cst_10 = arith.constant 1.000000e+00 : f32
    %cst_11 = arith.constant 0.000000e+00 : f32
    %31 = vector.broadcast %cst_10 : f32 to vector<8x128xf32>
    %32 = vector.broadcast %cst_11 : f32 to vector<8x128xf32>
    %33 = arith.select %26, %31, %32 : vector<8x128xi1>, vector<8x128xf32>
    %c0_12 = arith.constant 0 : index
    %c0_13 = arith.constant 0 : index
    %c0_14 = arith.constant 0 : index
    %c0_15 = arith.constant 0 : index
    %c0_16 = arith.constant 0 : index
    %c0_17 = arith.constant 0 : index
    %34 = vector.load %arg5[%c0_12, %c0_13, %c0_14, %c0_15, %c0_16, %c0_17] : memref<1x1x3x4x8x128xf32, #tpu.memory_space<vmem>>, vector<1x1x1x1x8x128xf32>
    %35 = vector.shape_cast %34 : vector<1x1x1x1x8x128xf32> to vector<8x128xf32>
    %36 = vector.shape_cast %28 : vector<8x128xf32> to vector<1x8x128xf32>
    %cst_18 = arith.constant dense<0.000000e+00> : vector<8x128xf32>
    %37 = vector.multi_reduction <add>, %36, %cst_18 [0] : vector<1x8x128xf32> to vector<8x128xf32>
    %38 = arith.addf %35, %37 : vector<8x128xf32>
    %c0_19 = arith.constant 0 : index
    %c0_20 = arith.constant 0 : index
    %c0_21 = arith.constant 0 : index
    %c0_22 = arith.constant 0 : index
    %c0_23 = arith.constant 0 : index
    %c0_24 = arith.constant 0 : index
    %39 = vector.load %arg5[%c0_19, %c0_20, %c0_21, %c0_22, %c0_23, %c0_24] : memref<1x1x3x4x8x128xf32, #tpu.memory_space<vmem>>, vector<1x1x1x1x8x128xf32>
    %40 = vector.shape_cast %39 : vector<1x1x1x1x8x128xf32> to vector<8x128xf32>
    %41 = vector.shape_cast %38 : vector<8x128xf32> to vector<1x1x1x1x8x128xf32>
    tpu.vector_store %arg5[%c0_19, %c0_20, %c0_21, %c0_22, %c0_23, %c0_24], %41 {strides = array<i32>} : memref<1x1x3x4x8x128xf32, #tpu.memory_space<vmem>>, vector<1x1x1x1x8x128xf32>,
    %c0_25 = arith.constant 0 : index
    %c0_26 = arith.constant 0 : index
    %c1 = arith.constant 1 : index
    %c0_27 = arith.constant 0 : index
    %c0_28 = arith.constant 0 : index
    %c0_29 = arith.constant 0 : index
    %42 = vector.load %arg5[%c0_25, %c0_26, %c1, %c0_27, %c0_28, %c0_29] : memref<1x1x3x4x8x128xf32, #tpu.memory_space<vmem>>, vector<1x1x1x1x8x128xf32>
    %43 = vector.shape_cast %42 : vector<1x1x1x1x8x128xf32> to vector<8x128xf32>
    %44 = vector.shape_cast %30 : vector<8x128xf32> to vector<1x8x128xf32>
    %cst_30 = arith.constant dense<0.000000e+00> : vector<8x128xf32>
    %45 = vector.multi_reduction <add>, %44, %cst_30 [0] : vector<1x8x128xf32> to vector<8x128xf32>
    %46 = arith.addf %43, %45 : vector<8x128xf32>
    %c0_31 = arith.constant 0 : index
    %c0_32 = arith.constant 0 : index
    %c1_33 = arith.constant 1 : index
    %c0_34 = arith.constant 0 : index
    %c0_35 = arith.constant 0 : index
    %c0_36 = arith.constant 0 : index
    %47 = vector.load %arg5[%c0_31, %c0_32, %c1_33, %c0_34, %c0_35, %c0_36] : memref<1x1x3x4x8x128xf32, #tpu.memory_space<vmem>>, vector<1x1x1x1x8x128xf32>
    %48 = vector.shape_cast %47 : vector<1x1x1x1x8x128xf32> to vector<8x128xf32>
    %49 = vector.shape_cast %46 : vector<8x128xf32> to vector<1x1x1x1x8x128xf32>
    tpu.vector_store %arg5[%c0_31, %c0_32, %c1_33, %c0_34, %c0_35, %c0_36], %49 {strides = array<i32>} : memref<1x1x3x4x8x128xf32, #tpu.memory_space<vmem>>, vector<1x1x1x1x8x128xf32>,
    %c0_37 = arith.constant 0 : index
    %c0_38 = arith.constant 0 : index
    %c2 = arith.constant 2 : index
    %c0_39 = arith.constant 0 : index
    %c0_40 = arith.constant 0 : index
    %c0_41 = arith.constant 0 : index
    %50 = vector.load %arg5[%c0_37, %c0_38, %c2, %c0_39, %c0_40, %c0_41] : memref<1x1x3x4x8x128xf32, #tpu.memory_space<vmem>>, vector<1x1x1x1x8x128xf32>
    %51 = vector.shape_cast %50 : vector<1x1x1x1x8x128xf32> to vector<8x128xf32>
    %52 = vector.shape_cast %33 : vector<8x128xf32> to vector<1x8x128xf32>
    %cst_42 = arith.constant dense<0.000000e+00> : vector<8x128xf32>
    %53 = vector.multi_reduction <add>, %52, %cst_42 [0] : vector<1x8x128xf32> to vector<8x128xf32>
    %54 = arith.addf %51, %53 : vector<8x128xf32>
    %c0_43 = arith.constant 0 : index
    %c0_44 = arith.constant 0 : index
    %c2_45 = arith.constant 2 : index
    %c0_46 = arith.constant 0 : index
    %c0_47 = arith.constant 0 : index
    %c0_48 = arith.constant 0 : index
    %55 = vector.load %arg5[%c0_43, %c0_44, %c2_45, %c0_46, %c0_47, %c0_48] : memref<1x1x3x4x8x128xf32, #tpu.memory_space<vmem>>, vector<1x1x1x1x8x128xf32>
    %56 = vector.shape_cast %55 : vector<1x1x1x1x8x128xf32> to vector<8x128xf32>
    %57 = vector.shape_cast %54 : vector<8x128xf32> to vector<1x1x1x1x8x128xf32>
    tpu.vector_store %arg5[%c0_43, %c0_44, %c2_45, %c0_46, %c0_47, %c0_48], %57 {strides = array<i32>} : memref<1x1x3x4x8x128xf32, #tpu.memory_space<vmem>>, vector<1x1x1x1x8x128xf32>,
    %c0_49 = arith.constant 0 : index
    %c1_50 = arith.constant 1 : index
    %c0_51 = arith.constant 0 : index
    %c0_52 = arith.constant 0 : index
    %58 = vector.load %arg3[%c0_49, %c1_50, %c0_51, %c0_52] : memref<1x4x8x128xf32, #tpu.memory_space<vmem>>, vector<1x1x8x128xf32>
    %59 = vector.shape_cast %58 : vector<1x1x8x128xf32> to vector<8x128xf32>
    %cst_53 = arith.constant 5.000000e-01 : f32
    %60 = vector.broadcast %cst_53 : f32 to vector<8x128xf32>
    %61 = arith.mulf %60, %59 : vector<8x128xf32>
    %62 = math.tanh %61 : vector<8x128xf32>
    %c1_i32_54 = arith.constant 1 : i32
    %63 = vector.broadcast %c1_i32_54 : i32 to vector<8x128xi32>
    %64 = arith.cmpi eq, %19, %63 : vector<8x128xi32>
    %cst_55 = arith.constant 0.000000e+00 : f32
    %65 = vector.broadcast %cst_55 : f32 to vector<8x128xf32>
    %66 = arith.select %64, %62, %65 : vector<8x128xi1>, vector<8x128xf32>
    %cst_56 = arith.constant 0.000000e+00 : f32
    %67 = vector.broadcast %cst_56 : f32 to vector<8x128xf32>
    %68 = arith.select %17, %62, %67 : vector<8x128xi1>, vector<8x128xf32>
    %cst_57 = arith.constant 1.000000e+00 : f32
    %cst_58 = arith.constant 0.000000e+00 : f32
    %69 = vector.broadcast %cst_57 : f32 to vector<8x128xf32>
    %70 = vector.broadcast %cst_58 : f32 to vector<8x128xf32>
    %71 = arith.select %64, %69, %70 : vector<8x128xi1>, vector<8x128xf32>
    %c0_59 = arith.constant 0 : index
    %c0_60 = arith.constant 0 : index
    %c0_61 = arith.constant 0 : index
    %c1_62 = arith.constant 1 : index
    %c0_63 = arith.constant 0 : index
    %c0_64 = arith.constant 0 : index
    %72 = vector.load %arg5[%c0_59, %c0_60, %c0_61, %c1_62, %c0_63, %c0_64] : memref<1x1x3x4x8x128xf32, #tpu.memory_space<vmem>>, vector<1x1x1x1x8x128xf32>
    %73 = vector.shape_cast %72 : vector<1x1x1x1x8x128xf32> to vector<8x128xf32>
    %74 = vector.shape_cast %66 : vector<8x128xf32> to vector<1x8x128xf32>
    %cst_65 = arith.constant dense<0.000000e+00> : vector<8x128xf32>
    %75 = vector.multi_reduction <add>, %74, %cst_65 [0] : vector<1x8x128xf32> to vector<8x128xf32>
    %76 = arith.addf %73, %75 : vector<8x128xf32>
    %c0_66 = arith.constant 0 : index
    %c0_67 = arith.constant 0 : index
    %c0_68 = arith.constant 0 : index
    %c1_69 = arith.constant 1 : index
    %c0_70 = arith.constant 0 : index
    %c0_71 = arith.constant 0 : index
    %77 = vector.load %arg5[%c0_66, %c0_67, %c0_68, %c1_69, %c0_70, %c0_71] : memref<1x1x3x4x8x128xf32, #tpu.memory_space<vmem>>, vector<1x1x1x1x8x128xf32>
    %78 = vector.shape_cast %77 : vector<1x1x1x1x8x128xf32> to vector<8x128xf32>
    %79 = vector.shape_cast %76 : vector<8x128xf32> to vector<1x1x1x1x8x128xf32>
    tpu.vector_store %arg5[%c0_66, %c0_67, %c0_68, %c1_69, %c0_70, %c0_71], %79 {strides = array<i32>} : memref<1x1x3x4x8x128xf32, #tpu.memory_space<vmem>>, vector<1x1x1x1x8x128xf32>,
    %c0_72 = arith.constant 0 : index
    %c0_73 = arith.constant 0 : index
    %c1_74 = arith.constant 1 : index
    %c1_75 = arith.constant 1 : index
    %c0_76 = arith.constant 0 : index
    %c0_77 = arith.constant 0 : index
    %80 = vector.load %arg5[%c0_72, %c0_73, %c1_74, %c1_75, %c0_76, %c0_77] : memref<1x1x3x4x8x128xf32, #tpu.memory_space<vmem>>, vector<1x1x1x1x8x128xf32>
    %81 = vector.shape_cast %80 : vector<1x1x1x1x8x128xf32> to vector<8x128xf32>
    %82 = vector.shape_cast %68 : vector<8x128xf32> to vector<1x8x128xf32>
    %cst_78 = arith.constant dense<0.000000e+00> : vector<8x128xf32>
    %83 = vector.multi_reduction <add>, %82, %cst_78 [0] : vector<1x8x128xf32> to vector<8x128xf32>
    %84 = arith.addf %81, %83 : vector<8x128xf32>
    %c0_79 = arith.constant 0 : index
    %c0_80 = arith.constant 0 : index
    %c1_81 = arith.constant 1 : index
    %c1_82 = arith.constant 1 : index
    %c0_83 = arith.constant 0 : index
    %c0_84 = arith.constant 0 : index
    %85 = vector.load %arg5[%c0_79, %c0_80, %c1_81, %c1_82, %c0_83, %c0_84] : memref<1x1x3x4x8x128xf32, #tpu.memory_space<vmem>>, vector<1x1x1x1x8x128xf32>
    %86 = vector.shape_cast %85 : vector<1x1x1x1x8x128xf32> to vector<8x128xf32>
    %87 = vector.shape_cast %84 : vector<8x128xf32> to vector<1x1x1x1x8x128xf32>
    tpu.vector_store %arg5[%c0_79, %c0_80, %c1_81, %c1_82, %c0_83, %c0_84], %87 {strides = array<i32>} : memref<1x1x3x4x8x128xf32, #tpu.memory_space<vmem>>, vector<1x1x1x1x8x128xf32>,
    %c0_85 = arith.constant 0 : index
    %c0_86 = arith.constant 0 : index
    %c2_87 = arith.constant 2 : index
    %c1_88 = arith.constant 1 : index
    %c0_89 = arith.constant 0 : index
    %c0_90 = arith.constant 0 : index
    %88 = vector.load %arg5[%c0_85, %c0_86, %c2_87, %c1_88, %c0_89, %c0_90] : memref<1x1x3x4x8x128xf32, #tpu.memory_space<vmem>>, vector<1x1x1x1x8x128xf32>
    %89 = vector.shape_cast %88 : vector<1x1x1x1x8x128xf32> to vector<8x128xf32>
    %90 = vector.shape_cast %71 : vector<8x128xf32> to vector<1x8x128xf32>
    %cst_91 = arith.constant dense<0.000000e+00> : vector<8x128xf32>
    %91 = vector.multi_reduction <add>, %90, %cst_91 [0] : vector<1x8x128xf32> to vector<8x128xf32>
    %92 = arith.addf %89, %91 : vector<8x128xf32>
    %c0_92 = arith.constant 0 : index
    %c0_93 = arith.constant 0 : index
    %c2_94 = arith.constant 2 : index
    %c1_95 = arith.constant 1 : index
    %c0_96 = arith.constant 0 : index
    %c0_97 = arith.constant 0 : index
    %93 = vector.load %arg5[%c0_92, %c0_93, %c2_94, %c1_95, %c0_96, %c0_97] : memref<1x1x3x4x8x128xf32, #tpu.memory_space<vmem>>, vector<1x1x1x1x8x128xf32>
    %94 = vector.shape_cast %93 : vector<1x1x1x1x8x128xf32> to vector<8x128xf32>
    %95 = vector.shape_cast %92 : vector<8x128xf32> to vector<1x1x1x1x8x128xf32>
    tpu.vector_store %arg5[%c0_92, %c0_93, %c2_94, %c1_95, %c0_96, %c0_97], %95 {strides = array<i32>} : memref<1x1x3x4x8x128xf32, #tpu.memory_space<vmem>>, vector<1x1x1x1x8x128xf32>,
    %c0_98 = arith.constant 0 : index
    %c2_99 = arith.constant 2 : index
    %c0_100 = arith.constant 0 : index
    %c0_101 = arith.constant 0 : index
    %96 = vector.load %arg3[%c0_98, %c2_99, %c0_100, %c0_101] : memref<1x4x8x128xf32, #tpu.memory_space<vmem>>, vector<1x1x8x128xf32>
    %97 = vector.shape_cast %96 : vector<1x1x8x128xf32> to vector<8x128xf32>
    %cst_102 = arith.constant 5.000000e-01 : f32
    %98 = vector.broadcast %cst_102 : f32 to vector<8x128xf32>
    %99 = arith.mulf %98, %97 : vector<8x128xf32>
    %100 = math.tanh %99 : vector<8x128xf32>
    %c2_i32 = arith.constant 2 : i32
    %101 = vector.broadcast %c2_i32 : i32 to vector<8x128xi32>
    %102 = arith.cmpi eq, %19, %101 : vector<8x128xi32>
    %cst_103 = arith.constant 0.000000e+00 : f32
    %103 = vector.broadcast %cst_103 : f32 to vector<8x128xf32>
    %104 = arith.select %102, %100, %103 : vector<8x128xi1>, vector<8x128xf32>
    %cst_104 = arith.constant 0.000000e+00 : f32
    %105 = vector.broadcast %cst_104 : f32 to vector<8x128xf32>
    %106 = arith.select %17, %100, %105 : vector<8x128xi1>, vector<8x128xf32>
    %cst_105 = arith.constant 1.000000e+00 : f32
    %cst_106 = arith.constant 0.000000e+00 : f32
    %107 = vector.broadcast %cst_105 : f32 to vector<8x128xf32>
    %108 = vector.broadcast %cst_106 : f32 to vector<8x128xf32>
    %109 = arith.select %102, %107, %108 : vector<8x128xi1>, vector<8x128xf32>
    %c0_107 = arith.constant 0 : index
    %c0_108 = arith.constant 0 : index
    %c0_109 = arith.constant 0 : index
    %c2_110 = arith.constant 2 : index
    %c0_111 = arith.constant 0 : index
    %c0_112 = arith.constant 0 : index
    %110 = vector.load %arg5[%c0_107, %c0_108, %c0_109, %c2_110, %c0_111, %c0_112] : memref<1x1x3x4x8x128xf32, #tpu.memory_space<vmem>>, vector<1x1x1x1x8x128xf32>
    %111 = vector.shape_cast %110 : vector<1x1x1x1x8x128xf32> to vector<8x128xf32>
    %112 = vector.shape_cast %104 : vector<8x128xf32> to vector<1x8x128xf32>
    %cst_113 = arith.constant dense<0.000000e+00> : vector<8x128xf32>
    %113 = vector.multi_reduction <add>, %112, %cst_113 [0] : vector<1x8x128xf32> to vector<8x128xf32>
    %114 = arith.addf %111, %113 : vector<8x128xf32>
    %c0_114 = arith.constant 0 : index
    %c0_115 = arith.constant 0 : index
    %c0_116 = arith.constant 0 : index
    %c2_117 = arith.constant 2 : index
    %c0_118 = arith.constant 0 : index
    %c0_119 = arith.constant 0 : index
    %115 = vector.load %arg5[%c0_114, %c0_115, %c0_116, %c2_117, %c0_118, %c0_119] : memref<1x1x3x4x8x128xf32, #tpu.memory_space<vmem>>, vector<1x1x1x1x8x128xf32>
    %116 = vector.shape_cast %115 : vector<1x1x1x1x8x128xf32> to vector<8x128xf32>
    %117 = vector.shape_cast %114 : vector<8x128xf32> to vector<1x1x1x1x8x128xf32>
    tpu.vector_store %arg5[%c0_114, %c0_115, %c0_116, %c2_117, %c0_118, %c0_119], %117 {strides = array<i32>} : memref<1x1x3x4x8x128xf32, #tpu.memory_space<vmem>>, vector<1x1x1x1x8x128xf32>,
    %c0_120 = arith.constant 0 : index
    %c0_121 = arith.constant 0 : index
    %c1_122 = arith.constant 1 : index
    %c2_123 = arith.constant 2 : index
    %c0_124 = arith.constant 0 : index
    %c0_125 = arith.constant 0 : index
    %118 = vector.load %arg5[%c0_120, %c0_121, %c1_122, %c2_123, %c0_124, %c0_125] : memref<1x1x3x4x8x128xf32, #tpu.memory_space<vmem>>, vector<1x1x1x1x8x128xf32>
    %119 = vector.shape_cast %118 : vector<1x1x1x1x8x128xf32> to vector<8x128xf32>
    %120 = vector.shape_cast %106 : vector<8x128xf32> to vector<1x8x128xf32>
    %cst_126 = arith.constant dense<0.000000e+00> : vector<8x128xf32>
    %121 = vector.multi_reduction <add>, %120, %cst_126 [0] : vector<1x8x128xf32> to vector<8x128xf32>
    %122 = arith.addf %119, %121 : vector<8x128xf32>
    %c0_127 = arith.constant 0 : index
    %c0_128 = arith.constant 0 : index
    %c1_129 = arith.constant 1 : index
    %c2_130 = arith.constant 2 : index
    %c0_131 = arith.constant 0 : index
    %c0_132 = arith.constant 0 : index
    %123 = vector.load %arg5[%c0_127, %c0_128, %c1_129, %c2_130, %c0_131, %c0_132] : memref<1x1x3x4x8x128xf32, #tpu.memory_space<vmem>>, vector<1x1x1x1x8x128xf32>
    %124 = vector.shape_cast %123 : vector<1x1x1x1x8x128xf32> to vector<8x128xf32>
    %125 = vector.shape_cast %122 : vector<8x128xf32> to vector<1x1x1x1x8x128xf32>
    tpu.vector_store %arg5[%c0_127, %c0_128, %c1_129, %c2_130, %c0_131, %c0_132], %125 {strides = array<i32>} : memref<1x1x3x4x8x128xf32, #tpu.memory_space<vmem>>, vector<1x1x1x1x8x128xf32>,
    %c0_133 = arith.constant 0 : index
    %c0_134 = arith.constant 0 : index
    %c2_135 = arith.constant 2 : index
    %c2_136 = arith.constant 2 : index
    %c0_137 = arith.constant 0 : index
    %c0_138 = arith.constant 0 : index
    %126 = vector.load %arg5[%c0_133, %c0_134, %c2_135, %c2_136, %c0_137, %c0_138] : memref<1x1x3x4x8x128xf32, #tpu.memory_space<vmem>>, vector<1x1x1x1x8x128xf32>
    %127 = vector.shape_cast %126 : vector<1x1x1x1x8x128xf32> to vector<8x128xf32>
    %128 = vector.shape_cast %109 : vector<8x128xf32> to vector<1x8x128xf32>
    %cst_139 = arith.constant dense<0.000000e+00> : vector<8x128xf32>
    %129 = vector.multi_reduction <add>, %128, %cst_139 [0] : vector<1x8x128xf32> to vector<8x128xf32>
    %130 = arith.addf %127, %129 : vector<8x128xf32>
    %c0_140 = arith.constant 0 : index
    %c0_141 = arith.constant 0 : index
    %c2_142 = arith.constant 2 : index
    %c2_143 = arith.constant 2 : index
    %c0_144 = arith.constant 0 : index
    %c0_145 = arith.constant 0 : index
    %131 = vector.load %arg5[%c0_140, %c0_141, %c2_142, %c2_143, %c0_144, %c0_145] : memref<1x1x3x4x8x128xf32, #tpu.memory_space<vmem>>, vector<1x1x1x1x8x128xf32>
    %132 = vector.shape_cast %131 : vector<1x1x1x1x8x128xf32> to vector<8x128xf32>
    %133 = vector.shape_cast %130 : vector<8x128xf32> to vector<1x1x1x1x8x128xf32>
    tpu.vector_store %arg5[%c0_140, %c0_141, %c2_142, %c2_143, %c0_144, %c0_145], %133 {strides = array<i32>} : memref<1x1x3x4x8x128xf32, #tpu.memory_space<vmem>>, vector<1x1x1x1x8x128xf32>,
    %c0_146 = arith.constant 0 : index
    %c3 = arith.constant 3 : index
    %c0_147 = arith.constant 0 : index
    %c0_148 = arith.constant 0 : index
    %134 = vector.load %arg3[%c0_146, %c3, %c0_147, %c0_148] : memref<1x4x8x128xf32, #tpu.memory_space<vmem>>, vector<1x1x8x128xf32>
    %135 = vector.shape_cast %134 : vector<1x1x8x128xf32> to vector<8x128xf32>
    %cst_149 = arith.constant 5.000000e-01 : f32
    %136 = vector.broadcast %cst_149 : f32 to vector<8x128xf32>
    %137 = arith.mulf %136, %135 : vector<8x128xf32>
    %138 = math.tanh %137 : vector<8x128xf32>
    %c3_i32 = arith.constant 3 : i32
    %139 = vector.broadcast %c3_i32 : i32 to vector<8x128xi32>
    %140 = arith.cmpi eq, %19, %139 : vector<8x128xi32>
    %cst_150 = arith.constant 0.000000e+00 : f32
    %141 = vector.broadcast %cst_150 : f32 to vector<8x128xf32>
    %142 = arith.select %140, %138, %141 : vector<8x128xi1>, vector<8x128xf32>
    %cst_151 = arith.constant 0.000000e+00 : f32
    %143 = vector.broadcast %cst_151 : f32 to vector<8x128xf32>
    %144 = arith.select %17, %138, %143 : vector<8x128xi1>, vector<8x128xf32>
    %cst_152 = arith.constant 1.000000e+00 : f32
    %cst_153 = arith.constant 0.000000e+00 : f32
    %145 = vector.broadcast %cst_152 : f32 to vector<8x128xf32>
    %146 = vector.broadcast %cst_153 : f32 to vector<8x128xf32>
    %147 = arith.select %140, %145, %146 : vector<8x128xi1>, vector<8x128xf32>
    %c0_154 = arith.constant 0 : index
    %c0_155 = arith.constant 0 : index
    %c0_156 = arith.constant 0 : index
    %c3_157 = arith.constant 3 : index
    %c0_158 = arith.constant 0 : index
    %c0_159 = arith.constant 0 : index
    %148 = vector.load %arg5[%c0_154, %c0_155, %c0_156, %c3_157, %c0_158, %c0_159] : memref<1x1x3x4x8x128xf32, #tpu.memory_space<vmem>>, vector<1x1x1x1x8x128xf32>
    %149 = vector.shape_cast %148 : vector<1x1x1x1x8x128xf32> to vector<8x128xf32>
    %150 = vector.shape_cast %142 : vector<8x128xf32> to vector<1x8x128xf32>
    %cst_160 = arith.constant dense<0.000000e+00> : vector<8x128xf32>
    %151 = vector.multi_reduction <add>, %150, %cst_160 [0] : vector<1x8x128xf32> to vector<8x128xf32>
    %152 = arith.addf %149, %151 : vector<8x128xf32>
    %c0_161 = arith.constant 0 : index
    %c0_162 = arith.constant 0 : index
    %c0_163 = arith.constant 0 : index
    %c3_164 = arith.constant 3 : index
    %c0_165 = arith.constant 0 : index
    %c0_166 = arith.constant 0 : index
    %153 = vector.load %arg5[%c0_161, %c0_162, %c0_163, %c3_164, %c0_165, %c0_166] : memref<1x1x3x4x8x128xf32, #tpu.memory_space<vmem>>, vector<1x1x1x1x8x128xf32>
    %154 = vector.shape_cast %153 : vector<1x1x1x1x8x128xf32> to vector<8x128xf32>
    %155 = vector.shape_cast %152 : vector<8x128xf32> to vector<1x1x1x1x8x128xf32>
    tpu.vector_store %arg5[%c0_161, %c0_162, %c0_163, %c3_164, %c0_165, %c0_166], %155 {strides = array<i32>} : memref<1x1x3x4x8x128xf32, #tpu.memory_space<vmem>>, vector<1x1x1x1x8x128xf32>,
    %c0_167 = arith.constant 0 : index
    %c0_168 = arith.constant 0 : index
    %c1_169 = arith.constant 1 : index
    %c3_170 = arith.constant 3 : index
    %c0_171 = arith.constant 0 : index
    %c0_172 = arith.constant 0 : index
    %156 = vector.load %arg5[%c0_167, %c0_168, %c1_169, %c3_170, %c0_171, %c0_172] : memref<1x1x3x4x8x128xf32, #tpu.memory_space<vmem>>, vector<1x1x1x1x8x128xf32>
    %157 = vector.shape_cast %156 : vector<1x1x1x1x8x128xf32> to vector<8x128xf32>
    %158 = vector.shape_cast %144 : vector<8x128xf32> to vector<1x8x128xf32>
    %cst_173 = arith.constant dense<0.000000e+00> : vector<8x128xf32>
    %159 = vector.multi_reduction <add>, %158, %cst_173 [0] : vector<1x8x128xf32> to vector<8x128xf32>
    %160 = arith.addf %157, %159 : vector<8x128xf32>
    %c0_174 = arith.constant 0 : index
    %c0_175 = arith.constant 0 : index
    %c1_176 = arith.constant 1 : index
    %c3_177 = arith.constant 3 : index
    %c0_178 = arith.constant 0 : index
    %c0_179 = arith.constant 0 : index
    %161 = vector.load %arg5[%c0_174, %c0_175, %c1_176, %c3_177, %c0_178, %c0_179] : memref<1x1x3x4x8x128xf32, #tpu.memory_space<vmem>>, vector<1x1x1x1x8x128xf32>
    %162 = vector.shape_cast %161 : vector<1x1x1x1x8x128xf32> to vector<8x128xf32>
    %163 = vector.shape_cast %160 : vector<8x128xf32> to vector<1x1x1x1x8x128xf32>
    tpu.vector_store %arg5[%c0_174, %c0_175, %c1_176, %c3_177, %c0_178, %c0_179], %163 {strides = array<i32>} : memref<1x1x3x4x8x128xf32, #tpu.memory_space<vmem>>, vector<1x1x1x1x8x128xf32>,
    %c0_180 = arith.constant 0 : index
    %c0_181 = arith.constant 0 : index
    %c2_182 = arith.constant 2 : index
    %c3_183 = arith.constant 3 : index
    %c0_184 = arith.constant 0 : index
    %c0_185 = arith.constant 0 : index
    %164 = vector.load %arg5[%c0_180, %c0_181, %c2_182, %c3_183, %c0_184, %c0_185] : memref<1x1x3x4x8x128xf32, #tpu.memory_space<vmem>>, vector<1x1x1x1x8x128xf32>
    %165 = vector.shape_cast %164 : vector<1x1x1x1x8x128xf32> to vector<8x128xf32>
    %166 = vector.shape_cast %147 : vector<8x128xf32> to vector<1x8x128xf32>
    %cst_186 = arith.constant dense<0.000000e+00> : vector<8x128xf32>
    %167 = vector.multi_reduction <add>, %166, %cst_186 [0] : vector<1x8x128xf32> to vector<8x128xf32>
    %168 = arith.addf %165, %167 : vector<8x128xf32>
    %c0_187 = arith.constant 0 : index
    %c0_188 = arith.constant 0 : index
    %c2_189 = arith.constant 2 : index
    %c3_190 = arith.constant 3 : index
    %c0_191 = arith.constant 0 : index
    %c0_192 = arith.constant 0 : index
    %169 = vector.load %arg5[%c0_187, %c0_188, %c2_189, %c3_190, %c0_191, %c0_192] : memref<1x1x3x4x8x128xf32, #tpu.memory_space<vmem>>, vector<1x1x1x1x8x128xf32>
    %170 = vector.shape_cast %169 : vector<1x1x1x1x8x128xf32> to vector<8x128xf32>
    %171 = vector.shape_cast %168 : vector<8x128xf32> to vector<1x1x1x1x8x128xf32>
    tpu.vector_store %arg5[%c0_187, %c0_188, %c2_189, %c3_190, %c0_191, %c0_192], %171 {strides = array<i32>} : memref<1x1x3x4x8x128xf32, #tpu.memory_space<vmem>>, vector<1x1x1x1x8x128xf32>,
    return
  }
  func.func @transform_0(%arg0: i32, %arg1: i32, %arg2: i32) -> (i32, i32, i32, i32) {
    %c1_i32 = arith.constant 1 : i32
    %0 = arith.muli %arg1, %c1_i32 : i32
    %1 = arith.addi %0, %arg2 : i32
    %c0_i32 = arith.constant 0 : i32
    %2 = arith.minsi %1, %c0_i32 : i32
    %c0_i32_0 = arith.constant 0 : i32
    %c0_i32_1 = arith.constant 0 : i32
    %c0_i32_2 = arith.constant 0 : i32
    return %arg0, %c0_i32_0, %2, %c0_i32_1 : i32, i32, i32, i32
  }
  func.func @transform_1(%arg0: i32, %arg1: i32, %arg2: i32) -> (i32, i32, i32) {
    %c1_i32 = arith.constant 1 : i32
    %0 = arith.muli %arg1, %c1_i32 : i32
    %1 = arith.addi %0, %arg2 : i32
    %c0_i32 = arith.constant 0 : i32
    %2 = arith.minsi %1, %c0_i32 : i32
    %c0_i32_0 = arith.constant 0 : i32
    %c0_i32_1 = arith.constant 0 : i32
    return %arg0, %2, %c0_i32_0 : i32, i32, i32
  }
  func.func @transform_2(%arg0: i32, %arg1: i32, %arg2: i32) -> (i32, i32, i32, i32, i32, i32) {
    %c0_i32 = arith.constant 0 : i32
    %c0_i32_0 = arith.constant 0 : i32
    %c0_i32_1 = arith.constant 0 : i32
    %c0_i32_2 = arith.constant 0 : i32
    %c0_i32_3 = arith.constant 0 : i32
    return %arg0, %arg1, %c0_i32, %c0_i32_0, %c0_i32_1, %c0_i32_2 : i32, i32, i32, i32, i32, i32
  }
}

</mosaic_0001>

<llo_original>
// kernel: tpu_custom_call.1
$region0: #{tpu_custom_call.1}
  #allocation0 [shape = 'u32[]', space=smem, size = 0x4, offset = 0x4, fixed_abs, tag = 'smem constant byte address 0x4 - core index']
  #allocation1 [shape = 'u32[144,128]{1,0:T(1,128)}', space=vmem, size = 0x12000, scoped, tag = 'internal scratch']
  %s0 = inlined_call_operand.hbm [shape: f32[2,4,8,128], index: 0, kind: input, shape index: {}]
  %s1 = inlined_call_operand.hbm [shape: s8[2,8,128], index: 1, kind: input, shape index: {}]
  %s2 = inlined_call_operand.hbm [shape: f32[2,1,3,4,8,128], index: 2, kind: output, shape index: {}]
  %s3 = sld [smem:[#allocation0]]
  $region53: #{tpu_custom_call.1} parent=0
    _
  %s5 = ssub.s32 1, %s3
  %s6 = scalar_select 0, %s5, %s3
  $region1: #{tpu_custom_call.1} parent=0
    #allocation2 [shape = 'u8[32768]{0}', space=vmem, size = 0x8000, scoped, tag = 'input window, operand 0']
    #allocation3 [shape = 's32[2]{0}', space=sflag, size = 0x8, scoped, tag = 'scoped memory for tpu_custom_call.1']
    #allocation4 [shape = 's32[2]{0}', space=sflag, size = 0x8, scoped, tag = 'scoped memory for tpu_custom_call.1']
    #allocation5 [shape = 'u8[2048]{0}', space=vmem, size = 0x800, scoped, tag = 'input window, operand 1']
    #allocation6 [shape = 's32[2]{0}', space=sflag, size = 0x8, scoped, tag = 'scoped memory for tpu_custom_call.1']
    #allocation7 [shape = 'u8[98304]{0}', space=vmem, size = 0x18000, scoped, tag = 'output window, operand 0']
    %7 = vsyncpa [#allocation3], 0
    %s8 = scalar_lea.sflag [#allocation3], 1
    %9 = vsyncpa %s8, 0
    %10 = vsyncpa [#allocation6], 0
    %s11 = scalar_lea.sflag [#allocation6], 1
    %12 = vsyncpa %s11, 0
    %13 = vsyncpa [#allocation4], 0
    %s14 = scalar_lea.sflag [#allocation4], 1
    %15 = vsyncpa %s14, 0
    loop: start=0, step=1, limit=4
    $region2: #{tpu_custom_call.1} parent=1 // loop_pre_header
      _
    $region3: #{tpu_custom_call.1} parent=1 // loop_header
      %s17 = sphi 0, %s21
      %p18 = scmp.ge.s32.totalorder %s17, 4
      %s24 = sphi 0, %s43
      %s25 = sphi 0, %s39
      %s26 = sphi 0, %s35
      %s27 = sphi 0, %s24
      %s28 = sphi 0, %s25
      %s29 = sphi 0, %s26
      %s30 = sphi 0, %s27
      %s31 = sphi 0, %s28
      %s32 = sphi 0, %s29
      %s54 = sphi 0, %s56
      %s57 = sphi 0, %s54
      %s58 = sphi 0, %s57
      %s74 = sphi 0, %s58
      %s88 = sphi 0, %s90
      %s91 = sphi 0, %s88
      %s92 = sphi 0, %s91
      %s108 = sphi 0, %s92
      %s116 = sphi 0, %s118
      %s119 = sphi 0, %s116
      %s120 = sphi 0, %s119
      %s136 = sphi 0, %s120
    $region4: #{tpu_custom_call.1} parent=1 // loop_header_branch
      %20 = sbr.rel (%p18) target = $region8
    $region5: #{tpu_custom_call.1} parent=1 // loop_body
      %s22 = ssub.s32 %s17, 1
      %s23 = ssub.s32 %s17, 2
      %s33 = sadd.s32 1, %s26
      %p34 = scmp.ge.s32.totalorder %s33, 1
      %s35 = scalar_select %p34, 0, %s33
      %s36 = sadd.s32 1, %s25
      %s37 = scalar_select %p34, %s36, %s25
      %p38 = scmp.ge.s32.totalorder %s37, 1
      %s39 = scalar_select %p38, 0, %s37
      %s40 = sadd.s32 1, %s24
      %s41 = scalar_select %p38, %s40, %s24
      %p42 = scmp.ge.s32.totalorder %s41, 2
      %s43 = scalar_select %p42, 0, %s41
      %s44 = sadd.s32 %s25, %s26
      %p45 = scmp.lt.s32.totalorder %s44, 0
      %s46 = scalar_select %p45, %s44, 0
      %s47 = sadd.s32 %s39, %s35
      %p48 = scmp.lt.s32.totalorder %s47, 0
      %s49 = scalar_select %p48, %s47, 0
      %s50 = ssub.s32 %s24, %s43
      %s51 = ssub.s32 %s46, %s49
      %s52 = sor.u32 %s50, %s51
      %p53 = scmp.eq.s32.totalorder %s52, 0
      %s55 = sadd.s32 %s54, 1
      %s56 = scalar_select %p53, %s54, %s55
      %p59 = pneg %p53
      %p60 = scmp.eq.s32.totalorder %s17, 1
      %p61 = por %p59, %p60
      %p62 = scmp.ne.s32.totalorder %s54, %s57
      %p63 = scmp.eq.s32.totalorder %s17, 0
      %p64 = por %p62, %p63
      %p65 = scmp.ne.s32.totalorder %s54, %s57
      %p66 = scmp.eq.s32.totalorder %s22, 1
      %p67 = por %p65, %p66
      %p68 = scmp.ne.s32.totalorder %s57, %s58
      %p69 = scmp.eq.s32.totalorder %s22, 0
      %p70 = por %p68, %p69
      %p71 = scmp.ne.s32.totalorder %s57, %s58
      %p72 = scmp.eq.s32.totalorder %s23, 1
      %p73 = por %p71, %p72
      %p75 = scmp.ne.s32.totalorder %s58, %s74
      %p76 = scmp.eq.s32.totalorder %s23, 0
      %p77 = por %p75, %p76
      %s78 = sadd.s32 %s25, %s26
      %p79 = scmp.lt.s32.totalorder %s78, 0
      %s80 = scalar_select %p79, %s78, 0
      %s81 = sadd.s32 %s39, %s35
      %p82 = scmp.lt.s32.totalorder %s81, 0
      %s83 = scalar_select %p82, %s81, 0
      %s84 = ssub.s32 %s24, %s43
      %s85 = ssub.s32 %s80, %s83
      %s86 = sor.u32 %s84, %s85
      %p87 = scmp.eq.s32.totalorder %s86, 0
      %s89 = sadd.s32 %s88, 1
      %s90 = scalar_select %p87, %s88, %s89
      %p93 = pneg %p87
      %p94 = scmp.eq.s32.totalorder %s17, 1
      %p95 = por %p93, %p94
      %p96 = scmp.ne.s32.totalorder %s88, %s91
      %p97 = scmp.eq.s32.totalorder %s17, 0
      %p98 = por %p96, %p97
      %p99 = scmp.ne.s32.totalorder %s88, %s91
      %p100 = scmp.eq.s32.totalorder %s22, 1
      %p101 = por %p99, %p100
      %p102 = scmp.ne.s32.totalorder %s91, %s92
      %p103 = scmp.eq.s32.totalorder %s22, 0
      %p104 = por %p102, %p103
      %p105 = scmp.ne.s32.totalorder %s91, %s92
      %p106 = scmp.eq.s32.totalorder %s23, 1
      %p107 = por %p105, %p106
      %p109 = scmp.ne.s32.totalorder %s92, %s108
      %p110 = scmp.eq.s32.totalorder %s23, 0
      %p111 = por %p109, %p110
      %s112 = ssub.s32 %s24, %s43
      %s113 = ssub.s32 %s25, %s39
      %s114 = sor.u32 %s112, %s113
      %p115 = scmp.eq.s32.totalorder %s114, 0
      %s117 = sadd.s32 %s116, 1
      %s118 = scalar_select %p115, %s116, %s117
      %p121 = pneg %p115
      %p122 = scmp.eq.s32.totalorder %s17, 1
      %p123 = por %p121, %p122
      %p124 = scmp.ne.s32.totalorder %s116, %s119
      %p125 = scmp.eq.s32.totalorder %s17, 0
      %p126 = por %p124, %p125
      %p127 = scmp.ne.s32.totalorder %s116, %s119
      %p128 = scmp.eq.s32.totalorder %s22, 1
      %p129 = por %p127, %p128
      %p130 = scmp.ne.s32.totalorder %s119, %s120
      %p131 = scmp.eq.s32.totalorder %s22, 0
      %p132 = por %p130, %p131
      %p133 = scmp.ne.s32.totalorder %s119, %s120
      %p134 = scmp.eq.s32.totalorder %s23, 1
      %p135 = por %p133, %p134
      %p137 = scmp.ne.s32.totalorder %s120, %s136
      %p138 = scmp.eq.s32.totalorder %s23, 0
      %p139 = por %p137, %p138
      %p140 = scmp.le.s32.totalorder 1, %s17
      %p141 = scmp.lt.s32.totalorder %s17, 3
      %p142 = pnand %p140, %p141
      %p143 = pneg %p142
      // Predicated region
      $region9: #{tpu_custom_call.1} parent=5 // pred_check
        _
      $region10: #{tpu_custom_call.1} parent=5 // pred_check_branch
        %145 = sbr.rel (%p142) target = $region12
      $region11: #{tpu_custom_call.1} parent=5 // pred_region
        %s146 = ssub.s32 %s17, 1
      $region12: #{tpu_custom_call.1} parent=5 // pred_fallthru
        _
      %p147 = scmp.lt.s32.totalorder %s17, 2
      // Predicated region
      $region13: #{tpu_custom_call.1} parent=5 // pred_check
        %p148 = pneg %p147
      $region14: #{tpu_custom_call.1} parent=5 // pred_check_branch
        %150 = sbr.rel (%p148) target = $region16
      $region15: #{tpu_custom_call.1} parent=5 // pred_region
        // Predicated region
        $region17: #{tpu_custom_call.1} parent=15 // pred_check
          %p151 = pneg %p64
        $region18: #{tpu_custom_call.1} parent=15 // pred_check_branch
          %153 = sbr.rel (%p151) target = $region20
        $region19: #{tpu_custom_call.1} parent=15 // pred_region
          %s154 = sand.u32 %s54, 1
          %s155 = scalar_lea.sflag [#allocation3], %s154
          %s156 = sand.u32 %s54, 1
          %s157 = smul.addr %s156, 32
          %s158 = scalar_lea.vmem [#allocation2], %s157
          %s159 = sadd.s32 %s25, %s26
          %p160 = scmp.lt.s32.totalorder %s159, 0
          %s161 = scalar_select %p160, %s159, 0
          %s163 = ssub.s32 512, 512
          %164 = vsyncadd %s155, %s163
          %s165 = smul.addr %s24, 4
          %s166 = sadd.s32 %s161, %s165
          %s167 = smul.addr %s166, 128
          %s168 = scalar_lea.hbm %s0, %s167
          %s169 = sshll.u32 %s158, 4
          %s170 = int_to_ptr.vmem [resolvable:$true] %s169
          %175 = dma.hbm_to_vmem [thread:$0]  %s168, 512, %s170, %s155, 128, 128, 8
        $region20: #{tpu_custom_call.1} parent=15 // pred_fallthru
          _
        // Predicated region
        $region21: #{tpu_custom_call.1} parent=15 // pred_check
          %p176 = pneg %p98
        $region22: #{tpu_custom_call.1} parent=15 // pred_check_branch
          %178 = sbr.rel (%p176) target = $region24
        $region23: #{tpu_custom_call.1} parent=15 // pred_region
          %s179 = sand.u32 %s88, 1
          %s180 = scalar_lea.sflag [#allocation6], %s179
          %s181 = sand.u32 %s88, 1
          %s182 = smul.addr %s181, 2
          %s183 = scalar_lea.vmem [#allocation5], %s182
          %s184 = sadd.s32 %s25, %s26
          %p185 = scmp.lt.s32.totalorder %s184, 0
          %s186 = scalar_select %p185, %s184, 0
          %s188 = ssub.s32 32, 32
          %189 = vsyncadd %s180, %s188
          %s190 = sadd.s32 %s186, %s24
          %s191 = smul.addr %s190, 32
          %s192 = scalar_lea.hbm %s1, %s191
          %s194 = sshll.u32 %s183, 4
          %s195 = int_to_ptr.vmem [resolvable:$true] %s194
          %197 = dma.hbm_to_vmem [thread:$0]  %s192, 32, %s195, %s180
        $region24: #{tpu_custom_call.1} parent=15 // pred_fallthru
          _
      $region16: #{tpu_custom_call.1} parent=5 // pred_fallthru
        _
      %p198 = scmp.le.s32.totalorder 1, %s17
      %p199 = scmp.lt.s32.totalorder %s17, 3
      %p200 = pnand %p198, %p199
      %p201 = pneg %p200
      // Predicated region
      $region25: #{tpu_custom_call.1} parent=5 // pred_check
        _
      $region26: #{tpu_custom_call.1} parent=5 // pred_check_branch
        %203 = sbr.rel (%p200) target = $region28
      $region27: #{tpu_custom_call.1} parent=5 // pred_region
        %s204 = ssub.s32 %s17, 1
        %s205 = sand.u32 %s57, 1
        %s206 = scalar_lea.sflag [#allocation3], %s205
        %s207 = sand.u32 %s57, 1
        %s208 = smul.addr %s207, 32
        %s209 = scalar_lea.vmem [#allocation2], %s208
        // Predicated region
        $region29: #{tpu_custom_call.1} parent=27 // pred_check
          %p210 = pneg %p70
        $region30: #{tpu_custom_call.1} parent=27 // pred_check_branch
          %212 = sbr.rel (%p210) target = $region32
        $region31: #{tpu_custom_call.1} parent=27 // pred_region
          %213 = dma.done %s206, 512
        $region32: #{tpu_custom_call.1} parent=27 // pred_fallthru
          _
        %s214 = sand.u32 %s91, 1
        %s215 = scalar_lea.sflag [#allocation6], %s214
        %s216 = sand.u32 %s91, 1
        %s217 = smul.addr %s216, 2
        %s218 = scalar_lea.vmem [#allocation5], %s217
        // Predicated region
        $region33: #{tpu_custom_call.1} parent=27 // pred_check
          %p219 = pneg %p104
        $region34: #{tpu_custom_call.1} parent=27 // pred_check_branch
          %221 = sbr.rel (%p219) target = $region36
        $region35: #{tpu_custom_call.1} parent=27 // pred_region
          %222 = dma.done %s215, 32
        $region36: #{tpu_custom_call.1} parent=27 // pred_fallthru
          _
        %s223 = sand.u32 %s57, 1
        %s224 = scalar_lea.sflag [#allocation3], %s223
        %s225 = sand.u32 %s57, 1
        %s226 = smul.addr %s225, 32
        %s227 = scalar_lea.vmem [#allocation2], %s226
        %p228 = pneg %p70
        %p229 = pneg %p67
        %s230 = sand.u32 %s91, 1
        %s231 = scalar_lea.sflag [#allocation6], %s230
        %s232 = sand.u32 %s91, 1
        %s233 = smul.addr %s232, 2
        %s234 = scalar_lea.vmem [#allocation5], %s233
        %p235 = pneg %p104
        %p236 = pneg %p101
        %p237 = pneg %p132
        %p238 = pneg %p129
        %s239 = sand.u32 %s119, 1
        %s240 = scalar_lea.sflag [#allocation4], %s239
        %s241 = sand.u32 %s119, 1
        %s242 = smul.addr %s241, 96
        %s243 = scalar_lea.vmem [#allocation7], %s242
        %s244 = sadd.s32 %s28, %s29
        %p245 = scmp.lt.s32.totalorder %s244, 0
        %s246 = scalar_select %p245, %s244, 0
        %s247 = sadd.s32 %s28, %s29
        %p248 = scmp.lt.s32.totalorder %s247, 0
        %s249 = scalar_select %p248, %s247, 0
        %p250 = scmp.eq.s32.totalorder %s29, 0
        // Predicated region
        $region37: #{tpu_custom_call.1} parent=27 // pred_check
          %p251 = pneg %p250
        $region38: #{tpu_custom_call.1} parent=27 // pred_check_branch
          %253 = sbr.rel (%p251) target = $region40
        $region39: #{tpu_custom_call.1} parent=27 // pred_region
          %254 = vst [vmem:[%s243] sm:$0xff] 0.0
          %255 = vst [vmem:[%s243 + $0x8] sm:$0xff] 0.0
          %256 = vst [vmem:[%s243 + $0x10] sm:$0xff] 0.0
          %257 = vst [vmem:[%s243 + $0x18] sm:$0xff] 0.0
          %258 = vst [vmem:[%s243 + $0x20] sm:$0xff] 0.0
          %259 = vst [vmem:[%s243 + $0x28] sm:$0xff] 0.0
          %260 = vst [vmem:[%s243 + $0x30] sm:$0xff] 0.0
          %261 = vst [vmem:[%s243 + $0x38] sm:$0xff] 0.0
          %262 = vst [vmem:[%s243 + $0x40] sm:$0xff] 0.0
          %263 = vst [vmem:[%s243 + $0x48] sm:$0xff] 0.0
          %264 = vst [vmem:[%s243 + $0x50] sm:$0xff] 0.0
          %265 = vst [vmem:[%s243 + $0x58] sm:$0xff] 0.0
        $region40: #{tpu_custom_call.1} parent=27 // pred_fallthru
          _
        %v266 = vld [vmem:[%s218] sm:$0x3]
        %v267 = vunpack.c.0.s8 %v266
        %s268 = sadd.s32 %s28, %s29
        %s269 = smul.u32 %s268, 1024
        %v270 = vlaneseq
        %v271 = vshrl.u32 %v270, 7
        %v272 = vlaneseq
        %v273 = vand.u32 %v272, 127
        %v274 = vmul.u32 %v271, 128
        %v275 = vstv %s269
        %v276 = vadd.s32 %v275, %v274
        %v277 = vadd.s32 %v276, %v273
        %vm278 = vcmp.lt.s32.totalorder %v277, 256
        %v279 = vsel %vm278, %v267, 4
        %v280 = vld [vmem:[%s209] sm:$0xff]
        %v281 = vmul.f32 %v280, 0.5
        %v282 = vtanh.pop %v281
        %vm283 = vcmp.eq.s32.totalorder %v279, 0
        %v284 = vsel %vm283, %v282, 0.0
        %v285 = vsel %vm278, %v282, 0.0
        %v286 = vsel %vm283, 1.0, 0.0
        %v287 = vld [vmem:[%s243] sm:$0xff]
        %v288 = vadd.f32 %v284, 0.0
        %v289 = vadd.f32 %v287, %v288
        %290 = vst [vmem:[%s243] sm:$0xff] %v289
        %s291 = scalar_lea.vmem %s243, 32 [#allocation7]
        %v292 = vld [vmem:[%s291] sm:$0xff]
        %v293 = vadd.f32 %v285, 0.0
        %v294 = vadd.f32 %v292, %v293
        %295 = vst [vmem:[%s291] sm:$0xff] %v294
        %s296 = scalar_lea.vmem %s243, 64 [#allocation7]
        %v297 = vld [vmem:[%s296] sm:$0xff]
        %v298 = vadd.f32 %v286, 0.0
        %v299 = vadd.f32 %v297, %v298
        %300 = vst [vmem:[%s296] sm:$0xff] %v299
        %s301 = scalar_lea.vmem %s209, 8 [#allocation2]
        %v302 = vld [vmem:[%s301] sm:$0xff]
        %v303 = vmul.f32 %v302, 0.5
        %v304 = vtanh.pop %v303
        %vm305 = vcmp.eq.s32.totalorder %v279, 1
        %v306 = vsel %vm305, %v304, 0.0
        %v307 = vsel %vm278, %v304, 0.0
        %v308 = vsel %vm305, 1.0, 0.0
        %s309 = scalar_lea.vmem %s243, 8 [#allocation7]
        %v310 = vld [vmem:[%s309] sm:$0xff]
        %v311 = vadd.f32 %v306, 0.0
        %v312 = vadd.f32 %v310, %v311
        %313 = vst [vmem:[%s309] sm:$0xff] %v312
        %s314 = scalar_lea.vmem %s243, 40 [#allocation7]
        %v315 = vld [vmem:[%s314] sm:$0xff]
        %v316 = vadd.f32 %v307, 0.0
        %v317 = vadd.f32 %v315, %v316
        %318 = vst [vmem:[%s314] sm:$0xff] %v317
        %s319 = scalar_lea.vmem %s243, 72 [#allocation7]
        %v320 = vld [vmem:[%s319] sm:$0xff]
        %v321 = vadd.f32 %v308, 0.0
        %v322 = vadd.f32 %v320, %v321
        %323 = vst [vmem:[%s319] sm:$0xff] %v322
        %s324 = scalar_lea.vmem %s209, 16 [#allocation2]
        %v325 = vld [vmem:[%s324] sm:$0xff]
        %v326 = vmul.f32 %v325, 0.5
        %v327 = vtanh.pop %v326
        %vm328 = vcmp.eq.s32.totalorder %v279, 2
        %v329 = vsel %vm328, %v327, 0.0
        %v330 = vsel %vm278, %v327, 0.0
        %v331 = vsel %vm328, 1.0, 0.0
        %s332 = scalar_lea.vmem %s243, 16 [#allocation7]
        %v333 = vld [vmem:[%s332] sm:$0xff]
        %v334 = vadd.f32 %v329, 0.0
        %v335 = vadd.f32 %v333, %v334
        %336 = vst [vmem:[%s332] sm:$0xff] %v335
        %s337 = scalar_lea.vmem %s243, 48 [#allocation7]
        %v338 = vld [vmem:[%s337] sm:$0xff]
        %v339 = vadd.f32 %v330, 0.0
        %v340 = vadd.f32 %v338, %v339
        %341 = vst [vmem:[%s337] sm:$0xff] %v340
        %s342 = scalar_lea.vmem %s243, 80 [#allocation7]
        %v343 = vld [vmem:[%s342] sm:$0xff]
        %v344 = vadd.f32 %v331, 0.0
        %v345 = vadd.f32 %v343, %v344
        %346 = vst [vmem:[%s342] sm:$0xff] %v345
        %s347 = scalar_lea.vmem %s209, 24 [#allocation2]
        %v348 = vld [vmem:[%s347] sm:$0xff]
        %v349 = vmul.f32 %v348, 0.5
        %v350 = vtanh.pop %v349
        %vm351 = vcmp.eq.s32.totalorder %v279, 3
        %v352 = vsel %vm351, %v350, 0.0
        %v353 = vsel %vm278, %v350, 0.0
        %v354 = vsel %vm351, 1.0, 0.0
        %s355 = scalar_lea.vmem %s243, 24 [#allocation7]
        %v356 = vld [vmem:[%s355] sm:$0xff]
        %v357 = vadd.f32 %v352, 0.0
        %v358 = vadd.f32 %v356, %v357
        %359 = vst [vmem:[%s355] sm:$0xff] %v358
        %s360 = scalar_lea.vmem %s243, 56 [#allocation7]
        %v361 = vld [vmem:[%s360] sm:$0xff]
        %v362 = vadd.f32 %v353, 0.0
        %v363 = vadd.f32 %v361, %v362
        %364 = vst [vmem:[%s360] sm:$0xff] %v363
        %s365 = scalar_lea.vmem %s243, 88 [#allocation7]
        %v366 = vld [vmem:[%s365] sm:$0xff]
        %v367 = vadd.f32 %v354, 0.0
        %v368 = vadd.f32 %v366, %v367
        %369 = vst [vmem:[%s365] sm:$0xff] %v368
        %s370 = sand.u32 %s119, 1
        %s371 = scalar_lea.sflag [#allocation4], %s370
        %s372 = sand.u32 %s119, 1
        %s373 = smul.addr %s372, 96
        %s374 = scalar_lea.vmem [#allocation7], %s373
        // Predicated region
        $region41: #{tpu_custom_call.1} parent=27 // pred_check
          %p375 = pneg %p129
        $region42: #{tpu_custom_call.1} parent=27 // pred_check_branch
          %377 = sbr.rel (%p375) target = $region44
        $region43: #{tpu_custom_call.1} parent=27 // pred_region
          %s379 = ssub.s32 1536, 1536
          %380 = vsyncadd %s371, %s379
          %s381 = smul.addr %s28, 12
          %s382 = smul.addr %s27, 12
          %s383 = sadd.s32 %s381, %s382
          %s384 = smul.addr %s383, 128
          %s385 = scalar_lea.hbm %s2, %s384
          %s386 = sshll.u32 %s374, 4
          %s387 = int_to_ptr.vmem [resolvable:$true] %s386
          %392 = dma.vmem_to_hbm [thread:$0]  %s387, 1536, %s385, %s371, 128, 128, 8
        $region44: #{tpu_custom_call.1} parent=27 // pred_fallthru
          _
      $region28: #{tpu_custom_call.1} parent=5 // pred_fallthru
        _
      %p393 = scmp.le.s32.totalorder 2, %s17
      // Predicated region
      $region45: #{tpu_custom_call.1} parent=5 // pred_check
        %p394 = pneg %p393
      $region46: #{tpu_custom_call.1} parent=5 // pred_check_branch
        %396 = sbr.rel (%p394) target = $region48
      $region47: #{tpu_custom_call.1} parent=5 // pred_region
        %s397 = ssub.s32 %s17, 2
        // Predicated region
        $region49: #{tpu_custom_call.1} parent=47 // pred_check
          %p398 = pneg %p135
        $region50: #{tpu_custom_call.1} parent=47 // pred_check_branch
          %400 = sbr.rel (%p398) target = $region52
        $region51: #{tpu_custom_call.1} parent=47 // pred_region
          %s401 = sand.u32 %s120, 1
          %s402 = scalar_lea.sflag [#allocation4], %s401
          %s403 = sand.u32 %s120, 1
          %s404 = smul.addr %s403, 96
          %s405 = scalar_lea.vmem [#allocation7], %s404
          %406 = dma.done %s402, 1536
        $region52: #{tpu_custom_call.1} parent=47 // pred_fallthru
          _
      $region48: #{tpu_custom_call.1} parent=5 // pred_fallthru
        _
    $region6: #{tpu_custom_call.1} parent=1 // loop_footer
      %s21 = sadd.s32 1, %s17
    $region7: #{tpu_custom_call.1} parent=1 // loop_footer_branch
      %16 = sbr.rel target = $region3
    $region8: #{tpu_custom_call.1} parent=1 // loop_exit
      _
    %407 = vsyncpa [#allocation3], 1
    %s408 = scalar_lea.sflag [#allocation3], 1
    %409 = vsyncpa %s408, 1
    %410 = vsyncpa [#allocation6], 1
    %s411 = scalar_lea.sflag [#allocation6], 1
    %412 = vsyncpa %s411, 1
    %413 = vsyncpa [#allocation4], 1
    %s414 = scalar_lea.sflag [#allocation4], 1
    %415 = vsyncpa %s414, 1

</llo_original>
